<compile_context>
chip_gen: v7x
topology: tpu7x:2x2x1
jax: 0.10.0
libtpu: 0.0.40
codegen_flags: <defaults>
</compile_context>

<pallas_src>
import functools

import jax
import jax.numpy as jnp
from jax.experimental import pallas as pl
from jax.experimental.pallas import tpu as pltpu


DIM_OBSERVATION = 4   # CartPole observation dim
N_ACTIONS = 2         # CartPole action dim
H1 = 16
H2 = 8

LANE = 128            # TPU lane width; padded feature dim for the hidden layers
NEG_MASK = -1e30      # logit value for padded (non-existent) action lanes

AUX_ROWS = 8                       # f32 aux block: w1 rows + 3 bias rows (8-sublane tile)
ROW_B1 = DIM_OBSERVATION           # row 4: b1
ROW_B2 = DIM_OBSERVATION + 1       # row 5: b2
ROW_B3 = DIM_OBSERVATION + 2       # row 6: b3 (+ NEG_MASK on padded action lanes)


def _round_up(x, m):
    return (x + m - 1) // m * m


def _choose_tile_b(B, max_tile_b):
    """Pick a batch tile: two balanced tiles when possible (v7x megacore), capped."""
    half = _round_up(-(-B // 2), 8)            # ceil(B/2) rounded up to 8 sublanes
    tb = max(8, min(half, max_tile_b))
    b_pad = _round_up(max(B, 1), tb)
    return tb, b_pad


def _policy_kernel(x_ref, w_ref, aux_ref, probs_ref, logp_ref):
    """Forward pass for one (tb, DIM_OBSERVATION) tile of states.

    x_ref    : (tb, 4)    f32 raw states (no lane padding).
    w_ref    : (256, 128) bf16 slab: rows [0:128)=padded W2, rows [128:256)=padded W3.
    aux_ref  : (8, 128)   f32: rows 0..3 = W1 (4x16), row 4 = b1, row 5 = b2,
                               row 6 = b3 with NEG_MASK in lanes [N_ACTIONS:128).
    probs_ref: (tb, 2)    f32 softmax probabilities.
    logp_ref : (tb, 2)    f32 log-probabilities (log-softmax).
    """
    x = x_ref[...]                              # (tb, 4) f32
    aux = aux_ref[...]                          # (8, 128) f32

    # Layer 1: Linear(4, 16) + ReLU on the VPU as 4 column-broadcast FMAs (f32).
    h = x[:, 0:1] * aux[0:1, :]
    for i in range(1, DIM_OBSERVATION):
        h = h + x[:, i:i + 1] * aux[i:i + 1, :]
    h = h + aux[ROW_B1:ROW_B1 + 1, :]
    h = jnp.maximum(h, 0.0)                     # (tb, 128) f32; lanes [16:) are 0

    # Layer 2: Linear(16, 8) + ReLU — bf16 MXU matmul, f32 accumulate + f32 bias.
    h = jnp.dot(h.astype(jnp.bfloat16), w_ref[0:LANE, :],
                preferred_element_type=jnp.float32)
    h = jnp.maximum(h + aux[ROW_B2:ROW_B2 + 1, :], 0.0)

    # Layer 3: Linear(8, n_actions); padded action lanes get bias == NEG_MASK.
    logits = jnp.dot(h.astype(jnp.bfloat16), w_ref[LANE:2 * LANE, :],
                     preferred_element_type=jnp.float32)
    logits = logits + aux[ROW_B3:ROW_B3 + 1, :]

    # Row-wise stable softmax / log-softmax (exact; padded lanes underflow to 0).
    m = jnp.max(logits, axis=-1, keepdims=True)
    e = jnp.exp(logits - m)
    s = jnp.sum(e, axis=-1, keepdims=True)
    probs = e * (1.0 / s)
    logp = (logits - m) - jnp.log(s)

    probs_ref[...] = probs[:, :N_ACTIONS]
    logp_ref[...] = logp[:, :N_ACTIONS]


def pack_params(params):
    """Pack (w1,b1,w2,b2,w3,b3) into (w_slab bf16 (256,128), aux f32 (8,128)).

    Weights are stored as (in_features, out_features) (transposed vs torch's
    nn.Linear.weight); biases as (out_features,).
    """
    w1, b1, w2, b2, w3, b3 = [jnp.asarray(a, jnp.float32) for a in params]
    b1, b2, b3 = b1.reshape(-1), b2.reshape(-1), b3.reshape(-1)

    w_slab = jnp.zeros((2 * LANE, LANE), jnp.float32)
    w_slab = w_slab.at[0:H1, 0:H2].set(w2)                     # layer 2
    w_slab = w_slab.at[LANE:LANE + H2, 0:N_ACTIONS].set(w3)    # layer 3
    w_slab = w_slab.astype(jnp.bfloat16)

    aux = jnp.zeros((AUX_ROWS, LANE), jnp.float32)
    aux = aux.at[0:DIM_OBSERVATION, 0:H1].set(w1)              # layer-1 weights (f32)
    aux = aux.at[ROW_B1, 0:H1].set(b1)
    aux = aux.at[ROW_B2, 0:H2].set(b2)
    aux = aux.at[ROW_B3, :].set(NEG_MASK)                      # kill padded actions
    aux = aux.at[ROW_B3, 0:N_ACTIONS].set(b3)
    return w_slab, aux


@functools.partial(jax.jit, static_argnames=("max_tile_b",))
def policy_forward_batch(states, w_slab, aux, *, max_tile_b=1024):
    """states: (B, 4) -> (probs (B, 2), log_probs (B, 2)) with row-wise softmax."""
    states = states.astype(jnp.float32)
    B = states.shape[0]
    tb, b_pad = _choose_tile_b(B, max_tile_b)
    if b_pad != B:
        states = jnp.concatenate(
            [states, jnp.zeros((b_pad - B, DIM_OBSERVATION), jnp.float32)], axis=0)

    probs, logp = pl.pallas_call(
        _policy_kernel,
        out_shape=(
            jax.ShapeDtypeStruct((b_pad, N_ACTIONS), jnp.float32),
            jax.ShapeDtypeStruct((b_pad, N_ACTIONS), jnp.float32),
        ),
        grid=(b_pad // tb,),
        in_specs=[
            pl.BlockSpec((tb, DIM_OBSERVATION), lambda i: (i, 0)),   # raw state tile
            pl.BlockSpec((2 * LANE, LANE), lambda i: (0, 0)),        # resident bf16 slab
            pl.BlockSpec((AUX_ROWS, LANE), lambda i: (0, 0)),        # resident f32 aux
        ],
        out_specs=[
            pl.BlockSpec((tb, N_ACTIONS), lambda i: (i, 0)),
            pl.BlockSpec((tb, N_ACTIONS), lambda i: (i, 0)),
        ],
        compiler_params=pltpu.CompilerParams(
            dimension_semantics=("parallel",),                       # megacore on v7x
        ),
    )(states, w_slab, aux)

    return probs[:B], logp[:B]


def policy_forward(state, w_slab, aux):
    """Original module semantics: (4,) -> (n_actions,) probabilities (Softmax(dim=0))."""
    # TODO(synk): B=1 is host-dispatch bound; batch environments for real rollouts.
    probs, _ = policy_forward_batch(
        jnp.asarray(state, jnp.float32).reshape(1, DIM_OBSERVATION), w_slab, aux)
    return probs[0]


def select_action(key, state, w_slab, aux):
    """Model.select_action: torch.multinomial == categorical over the policy probs."""
    _, logp = policy_forward_batch(
        jnp.asarray(state, jnp.float32).reshape(1, DIM_OBSERVATION), w_slab, aux)
    return jax.random.categorical(key, logp[0])


def init_params(key):
    """nn.Linear-style init: U(-1/sqrt(fan_in), 1/sqrt(fan_in)); weights (in, out)."""
    def linear(key, fan_in, fan_out):
        kw, kb = jax.random.split(key)
        bound = 1.0 / jnp.sqrt(float(fan_in))
        w = jax.random.uniform(kw, (fan_in, fan_out), jnp.float32, -bound, bound)
        b = jax.random.uniform(kb, (fan_out,), jnp.float32, -bound, bound)
        return w, b

    k1, k2, k3 = jax.random.split(key, 3)
    w1, b1 = linear(k1, DIM_OBSERVATION, H1)
    w2, b2 = linear(k2, H1, H2)
    w3, b3 = linear(k3, H2, N_ACTIONS)
    return (w1, b1, w2, b2, w3, b3)


def _reference_f32(states, params):
    """Pure f32 reference of the module forward."""
    w1, b1, w2, b2, w3, b3 = params
    h1 = jnp.maximum(states @ w1 + b1, 0.0)
    h2 = jnp.maximum(h1 @ w2 + b2, 0.0)
    logits = h2 @ w3 + b3
    return jax.nn.softmax(logits, axis=-1)


def _reference_matched(states, params):
    """Reference mirroring the kernel numerics (f32 layer 1, bf16 MXU layers 2-3)."""
    w1, b1, w2, b2, w3, b3 = params
    h1 = jnp.maximum(states @ w1 + b1, 0.0)
    h2 = jnp.dot(h1.astype(jnp.bfloat16), w2.astype(jnp.bfloat16),
                 preferred_element_type=jnp.float32) + b2
    h2 = jnp.maximum(h2, 0.0)
    logits = jnp.dot(h2.astype(jnp.bfloat16), w3.astype(jnp.bfloat16),
                     preferred_element_type=jnp.float32) + b3
    return jax.nn.softmax(logits, axis=-1), jax.nn.log_softmax(logits, axis=-1)


if __name__ == "__main__":
    key = jax.random.PRNGKey(0)
    k_params, k_state, k_act = jax.random.split(key, 3)

    params = init_params(k_params)
    w_slab, aux = pack_params(params)

    # Batched rollout-style evaluation: 256 states -> two 128-row tiles on the grid.
    B = 256
    states = jax.random.normal(k_state, (B, DIM_OBSERVATION), jnp.float32)

    probs, logp = policy_forward_batch(states, w_slab, aux)
    probs, logp = jax.block_until_ready((probs, logp))

    ref_probs_m, ref_logp_m = _reference_matched(states, params)
    ref_probs_f32 = _reference_f32(states, params)

    assert probs.shape == (B, N_ACTIONS) and logp.shape == (B, N_ACTIONS)
    assert bool(jnp.allclose(jnp.sum(probs, axis=-1), 1.0, atol=1e-5))
    assert bool(jnp.allclose(probs, jnp.exp(logp), atol=1e-5))
    assert bool(jnp.allclose(probs, ref_probs_m, atol=1e-4, rtol=1e-4))
    assert bool(jnp.allclose(logp, ref_logp_m, atol=1e-4, rtol=1e-4))
    assert bool(jnp.allclose(probs, ref_probs_f32, atol=1e-2, rtol=1e-2))

    # Non-multiple batch (exercises the padded-row path).
    probs5, logp5 = jax.block_until_ready(policy_forward_batch(states[:5], w_slab, aux))
    assert probs5.shape == (5, N_ACTIONS)
    assert bool(jnp.allclose(probs5, probs[:5], atol=1e-5))

    # Single-state path (exact semantics of Model.forward: Softmax(dim=0) over actions).
    p1 = jax.block_until_ready(policy_forward(states[0], w_slab, aux))
    assert p1.shape == (N_ACTIONS,)
    assert bool(jnp.allclose(p1, ref_probs_m[0], atol=1e-4, rtol=1e-4))

    # Model.select_action: categorical sample over the policy distribution.
    a = jax.block_until_ready(select_action(k_act, states[0], w_slab, aux))
    assert int(a) in (0, 1)

    print("KERNEL_OK")
</pallas_src>

<mosaic_0001>
module attributes {stable_mosaic.version = 11 : i64} {
  func.func @_policy_kernel(%arg0: i32, %arg1: memref<128x4xf32, #tpu.memory_space<vmem>>, %arg2: memref<256x128xbf16, #tpu.memory_space<vmem>>, %arg3: memref<8x128xf32, #tpu.memory_space<vmem>>, %arg4: memref<128x2xf32, #tpu.memory_space<vmem>>, %arg5: memref<128x2xf32, #tpu.memory_space<vmem>>) attributes {dimension_semantics = [#tpu.dimension_semantics<parallel>], iteration_bounds = array<i64: 2>, scalar_prefetch = 0 : i64, scratch_operands = 0 : i64, tpu.core_type = #tpu.core_type<tc>, window_params = [{transform_indices = @transform_0, window_bounds = array<i64: 128, 4>}, {pipeline_mode = #tpu.pipeline_mode<synchronous>, transform_indices = @transform_1, window_bounds = array<i64: 256, 128>}, {pipeline_mode = #tpu.pipeline_mode<synchronous>, transform_indices = @transform_2, window_bounds = array<i64: 8, 128>}, {transform_indices = @transform_3, window_bounds = array<i64: 128, 2>}, {transform_indices = @transform_4, window_bounds = array<i64: 128, 2>}]} {
    %c0 = arith.constant 0 : index
    %c0_0 = arith.constant 0 : index
    %0 = vector.load %arg1[%c0, %c0_0] : memref<128x4xf32, #tpu.memory_space<vmem>>, vector<128x4xf32>
    %c0_1 = arith.constant 0 : index
    %c0_2 = arith.constant 0 : index
    %1 = vector.load %arg3[%c0_1, %c0_2] : memref<8x128xf32, #tpu.memory_space<vmem>>, vector<8x128xf32>
    %2 = vector.extract_strided_slice %0 {offsets = [0, 0], sizes = [128, 1], strides = [1, 1]} : vector<128x4xf32> to vector<128x1xf32>
    %3 = vector.extract_strided_slice %1 {offsets = [0, 0], sizes = [1, 128], strides = [1, 1]} : vector<8x128xf32> to vector<1x128xf32>
    %4 = vector.broadcast %2 : vector<128x1xf32> to vector<128x128xf32>
    %5 = vector.broadcast %3 : vector<1x128xf32> to vector<128x128xf32>
    %6 = arith.mulf %4, %5 : vector<128x128xf32>
    %7 = vector.extract_strided_slice %0 {offsets = [0, 1], sizes = [128, 1], strides = [1, 1]} : vector<128x4xf32> to vector<128x1xf32>
    %8 = vector.extract_strided_slice %1 {offsets = [1, 0], sizes = [1, 128], strides = [1, 1]} : vector<8x128xf32> to vector<1x128xf32>
    %9 = vector.broadcast %7 : vector<128x1xf32> to vector<128x128xf32>
    %10 = vector.broadcast %8 : vector<1x128xf32> to vector<128x128xf32>
    %11 = arith.mulf %9, %10 : vector<128x128xf32>
    %12 = arith.addf %6, %11 : vector<128x128xf32>
    %13 = vector.extract_strided_slice %0 {offsets = [0, 2], sizes = [128, 1], strides = [1, 1]} : vector<128x4xf32> to vector<128x1xf32>
    %14 = vector.extract_strided_slice %1 {offsets = [2, 0], sizes = [1, 128], strides = [1, 1]} : vector<8x128xf32> to vector<1x128xf32>
    %15 = vector.broadcast %13 : vector<128x1xf32> to vector<128x128xf32>
    %16 = vector.broadcast %14 : vector<1x128xf32> to vector<128x128xf32>
    %17 = arith.mulf %15, %16 : vector<128x128xf32>
    %18 = arith.addf %12, %17 : vector<128x128xf32>
    %19 = vector.extract_strided_slice %0 {offsets = [0, 3], sizes = [128, 1], strides = [1, 1]} : vector<128x4xf32> to vector<128x1xf32>
    %20 = vector.extract_strided_slice %1 {offsets = [3, 0], sizes = [1, 128], strides = [1, 1]} : vector<8x128xf32> to vector<1x128xf32>
    %21 = vector.broadcast %19 : vector<128x1xf32> to vector<128x128xf32>
    %22 = vector.broadcast %20 : vector<1x128xf32> to vector<128x128xf32>
    %23 = arith.mulf %21, %22 : vector<128x128xf32>
    %24 = arith.addf %18, %23 : vector<128x128xf32>
    %25 = vector.extract_strided_slice %1 {offsets = [4, 0], sizes = [1, 128], strides = [1, 1]} : vector<8x128xf32> to vector<1x128xf32>
    %26 = vector.broadcast %25 : vector<1x128xf32> to vector<128x128xf32>
    %27 = arith.addf %24, %26 : vector<128x128xf32>
    %cst = arith.constant 0.000000e+00 : f32
    %28 = vector.broadcast %cst : f32 to vector<128x128xf32>
    %29 = arith.maximumf %27, %28 : vector<128x128xf32>
    %30 = arith.truncf %29 : vector<128x128xf32> to vector<128x128xbf16>
    %c0_3 = arith.constant 0 : index
    %c0_4 = arith.constant 0 : index
    %31 = vector.load %arg2[%c0_3, %c0_4] : memref<256x128xbf16, #tpu.memory_space<vmem>>, vector<128x128xbf16>
    %cst_5 = arith.constant dense<0.000000e+00> : vector<128x128xf32>
    %32 = tpu.matmul %30, %31, %cst_5 {dimension_numbers = #tpu.dot_dimension_numbers<[1], [0], [0], [1], [0, 0, 1, 1], [], []>} : vector<128x128xbf16>, vector<128x128xbf16>, vector<128x128xf32> -> vector<128x128xf32>
    %33 = vector.extract_strided_slice %1 {offsets = [5, 0], sizes = [1, 128], strides = [1, 1]} : vector<8x128xf32> to vector<1x128xf32>
    %34 = vector.broadcast %33 : vector<1x128xf32> to vector<128x128xf32>
    %35 = arith.addf %32, %34 : vector<128x128xf32>
    %cst_6 = arith.constant 0.000000e+00 : f32
    %36 = vector.broadcast %cst_6 : f32 to vector<128x128xf32>
    %37 = arith.maximumf %35, %36 : vector<128x128xf32>
    %38 = arith.truncf %37 : vector<128x128xf32> to vector<128x128xbf16>
    %c128 = arith.constant 128 : index
    %c0_7 = arith.constant 0 : index
    %39 = vector.load %arg2[%c128, %c0_7] : memref<256x128xbf16, #tpu.memory_space<vmem>>, vector<128x128xbf16>
    %cst_8 = arith.constant dense<0.000000e+00> : vector<128x128xf32>
    %40 = tpu.matmul %38, %39, %cst_8 {dimension_numbers = #tpu.dot_dimension_numbers<[1], [0], [0], [1], [0, 0, 1, 1], [], []>} : vector<128x128xbf16>, vector<128x128xbf16>, vector<128x128xf32> -> vector<128x128xf32>
    %41 = vector.extract_strided_slice %1 {offsets = [6, 0], sizes = [1, 128], strides = [1, 1]} : vector<8x128xf32> to vector<1x128xf32>
    %42 = vector.broadcast %41 : vector<1x128xf32> to vector<128x128xf32>
    %43 = arith.addf %40, %42 : vector<128x128xf32>
    %cst_9 = arith.constant dense<0xFF800000> : vector<128xf32>
    %44 = vector.multi_reduction <maximumf>, %43, %cst_9 [1] : vector<128x128xf32> to vector<128xf32>
    %45 = vector.shape_cast %44 : vector<128xf32> to vector<128x1xf32>
    %46 = vector.broadcast %45 : vector<128x1xf32> to vector<128x128xf32>
    %47 = arith.subf %43, %46 : vector<128x128xf32>
    %48 = math.exp %47 : vector<128x128xf32>
    %cst_10 = arith.constant dense<0.000000e+00> : vector<128xf32>
    %49 = vector.multi_reduction <add>, %48, %cst_10 [1] : vector<128x128xf32> to vector<128xf32>
    %50 = vector.shape_cast %49 : vector<128xf32> to vector<128x1xf32>
    %cst_11 = arith.constant 1.000000e+00 : f32
    %51 = vector.broadcast %cst_11 : f32 to vector<128x1xf32>
    %52 = arith.divf %51, %50 : vector<128x1xf32>
    %53 = vector.broadcast %52 : vector<128x1xf32> to vector<128x128xf32>
    %54 = arith.mulf %48, %53 : vector<128x128xf32>
    %55 = vector.broadcast %45 : vector<128x1xf32> to vector<128x128xf32>
    %56 = arith.subf %43, %55 : vector<128x128xf32>
    %57 = math.log %50 : vector<128x1xf32>
    %58 = vector.broadcast %57 : vector<128x1xf32> to vector<128x128xf32>
    %59 = arith.subf %56, %58 : vector<128x128xf32>
    %60 = vector.extract_strided_slice %54 {offsets = [0, 0], sizes = [128, 2], strides = [1, 1]} : vector<128x128xf32> to vector<128x2xf32>
    %c0_12 = arith.constant 0 : index
    %c0_13 = arith.constant 0 : index
    %61 = vector.load %arg4[%c0_12, %c0_13] : memref<128x2xf32, #tpu.memory_space<vmem>>, vector<128x2xf32>
    tpu.vector_store %arg4[%c0_12, %c0_13], %60 {strides = array<i32>} : memref<128x2xf32, #tpu.memory_space<vmem>>, vector<128x2xf32>,
    %62 = vector.extract_strided_slice %59 {offsets = [0, 0], sizes = [128, 2], strides = [1, 1]} : vector<128x128xf32> to vector<128x2xf32>
    %c0_14 = arith.constant 0 : index
    %c0_15 = arith.constant 0 : index
    %63 = vector.load %arg5[%c0_14, %c0_15] : memref<128x2xf32, #tpu.memory_space<vmem>>, vector<128x2xf32>
    tpu.vector_store %arg5[%c0_14, %c0_15], %62 {strides = array<i32>} : memref<128x2xf32, #tpu.memory_space<vmem>>, vector<128x2xf32>,
    return
  }
  func.func @transform_0(%arg0: i32) -> (i32, i32) {
    %c0_i32 = arith.constant 0 : i32
    %c0_i32_0 = arith.constant 0 : i32
    return %arg0, %c0_i32 : i32, i32
  }
  func.func @transform_1(%arg0: i32) -> (i32, i32) {
    %c0_i32 = arith.constant 0 : i32
    %c0_i32_0 = arith.constant 0 : i32
    %c0_i32_1 = arith.constant 0 : i32
    return %c0_i32, %c0_i32_0 : i32, i32
  }
  func.func @transform_2(%arg0: i32) -> (i32, i32) {
    %c0_i32 = arith.constant 0 : i32
    %c0_i32_0 = arith.constant 0 : i32
    %c0_i32_1 = arith.constant 0 : i32
    return %c0_i32, %c0_i32_0 : i32, i32
  }
  func.func @transform_3(%arg0: i32) -> (i32, i32) {
    %c0_i32 = arith.constant 0 : i32
    %c0_i32_0 = arith.constant 0 : i32
    return %arg0, %c0_i32 : i32, i32
  }
  func.func @transform_4(%arg0: i32) -> (i32, i32) {
    %c0_i32 = arith.constant 0 : i32
    %c0_i32_0 = arith.constant 0 : i32
    return %arg0, %c0_i32 : i32, i32
  }
}

</mosaic_0001>

<llo_original>
// kernel: policy_forward_batch.1
$region0: #{policy_forward_batch.1}
  #allocation0 [shape = 'u32[]', space=smem, size = 0x4, offset = 0x4, fixed_abs, tag = 'smem constant byte address 0x4 - core index']
  #allocation1 [shape = 'u32[144,128]{1,0:T(1,128)}', space=vmem, size = 0x12000, scoped, tag = 'internal scratch']
  %s0 = inlined_call_operand.vmem [shape: f32[256,4], index: 0, kind: input, shape index: {}]
  %s1 = inlined_call_operand.vmem [shape: bf16[256,128], index: 1, kind: input, shape index: {}]
  %s2 = inlined_call_operand.vmem [shape: f32[8,128], index: 2, kind: input, shape index: {}]
  %s3 = inlined_call_operand.vmem [shape: f32[256,2], index: 3, kind: output, shape index: {0}]
  %s4 = inlined_call_operand.vmem [shape: f32[256,2], index: 4, kind: output, shape index: {1}]
  %5 = xla_tuple %s3, %s4
  %s6 = sld [smem:[#allocation0]]
  $region53: #{policy_forward_batch.1} parent=0
    _
  %s8 = ssub.s32 1, %s6
  %s9 = scalar_select 0, %s8, %s6
  loop: start=0, step=1, limit=4
  $region2: #{policy_forward_batch.1} parent=0 // loop_pre_header
    _
  $region3: #{policy_forward_batch.1} parent=0 // loop_header
    %s11 = sphi 0, %s15
    %p12 = scmp.ge.s32.totalorder %s11, 4
    %s21 = sphi 0, %s23
    %s24 = sphi 0, %s21
    %s25 = sphi 0, %s24
    %s41 = sphi 0, %s25
    %s45 = sphi 0, %s45
    %s47 = sphi 0, %s45
    %s48 = sphi 0, %s47
    %s62 = sphi 0, %s48
    %s66 = sphi 0, %s66
    %s68 = sphi 0, %s66
    %s69 = sphi 0, %s68
    %s83 = sphi 0, %s69
    %s89 = sphi 0, %s91
    %s92 = sphi 0, %s89
    %s93 = sphi 0, %s92
    %s109 = sphi 0, %s93
    %s115 = sphi 0, %s117
    %s118 = sphi 0, %s115
    %s119 = sphi 0, %s118
    %s135 = sphi 0, %s119
  $region4: #{policy_forward_batch.1} parent=0 // loop_header_branch
    %14 = sbr.rel (%p12) target = $region8
  $region5: #{policy_forward_batch.1} parent=0 // loop_body
    %s16 = ssub.s32 %s11, 1
    %s17 = ssub.s32 %s11, 2
    %s18 = sadd.s32 %s11, 1
    %s19 = ssub.s32 %s11, %s18
    %p20 = scmp.eq.s32.totalorder %s19, 0
    %s22 = sadd.s32 %s21, 1
    %s23 = scalar_select %p20, %s21, %s22
    %p26 = pneg %p20
    %p27 = scmp.eq.s32.totalorder %s11, 1
    %p28 = por %p26, %p27
    %p29 = scmp.ne.s32.totalorder %s21, %s24
    %p30 = scmp.eq.s32.totalorder %s11, 0
    %p31 = por %p29, %p30
    %p32 = scmp.ne.s32.totalorder %s21, %s24
    %p33 = scmp.eq.s32.totalorder %s16, 1
    %p34 = por %p32, %p33
    %p35 = scmp.ne.s32.totalorder %s24, %s25
    %p36 = scmp.eq.s32.totalorder %s16, 0
    %p37 = por %p35, %p36
    %p38 = scmp.ne.s32.totalorder %s24, %s25
    %p39 = scmp.eq.s32.totalorder %s17, 1
    %p40 = por %p38, %p39
    %p42 = scmp.ne.s32.totalorder %s25, %s41
    %p43 = scmp.eq.s32.totalorder %s17, 0
    %p44 = por %p42, %p43
    %s46 = sadd.s32 %s45, 1
    %p49 = scmp.eq.s32.totalorder %s11, 1
    %p50 = scmp.ne.s32.totalorder %s45, %s47
    %p51 = scmp.eq.s32.totalorder %s11, 0
    %p52 = por %p50, %p51
    %p53 = scmp.ne.s32.totalorder %s45, %s47
    %p54 = scmp.eq.s32.totalorder %s16, 1
    %p55 = por %p53, %p54
    %p56 = scmp.ne.s32.totalorder %s47, %s48
    %p57 = scmp.eq.s32.totalorder %s16, 0
    %p58 = por %p56, %p57
    %p59 = scmp.ne.s32.totalorder %s47, %s48
    %p60 = scmp.eq.s32.totalorder %s17, 1
    %p61 = por %p59, %p60
    %p63 = scmp.ne.s32.totalorder %s48, %s62
    %p64 = scmp.eq.s32.totalorder %s17, 0
    %p65 = por %p63, %p64
    %s67 = sadd.s32 %s66, 1
    %p70 = scmp.eq.s32.totalorder %s11, 1
    %p71 = scmp.ne.s32.totalorder %s66, %s68
    %p72 = scmp.eq.s32.totalorder %s11, 0
    %p73 = por %p71, %p72
    %p74 = scmp.ne.s32.totalorder %s66, %s68
    %p75 = scmp.eq.s32.totalorder %s16, 1
    %p76 = por %p74, %p75
    %p77 = scmp.ne.s32.totalorder %s68, %s69
    %p78 = scmp.eq.s32.totalorder %s16, 0
    %p79 = por %p77, %p78
    %p80 = scmp.ne.s32.totalorder %s68, %s69
    %p81 = scmp.eq.s32.totalorder %s17, 1
    %p82 = por %p80, %p81
    %p84 = scmp.ne.s32.totalorder %s69, %s83
    %p85 = scmp.eq.s32.totalorder %s17, 0
    %p86 = por %p84, %p85
    %s87 = ssub.s32 %s11, %s18
    %p88 = scmp.eq.s32.totalorder %s87, 0
    %s90 = sadd.s32 %s89, 1
    %s91 = scalar_select %p88, %s89, %s90
    %p94 = pneg %p88
    %p95 = scmp.eq.s32.totalorder %s11, 1
    %p96 = por %p94, %p95
    %p97 = scmp.ne.s32.totalorder %s89, %s92
    %p98 = scmp.eq.s32.totalorder %s11, 0
    %p99 = por %p97, %p98
    %p100 = scmp.ne.s32.totalorder %s89, %s92
    %p101 = scmp.eq.s32.totalorder %s16, 1
    %p102 = por %p100, %p101
    %p103 = scmp.ne.s32.totalorder %s92, %s93
    %p104 = scmp.eq.s32.totalorder %s16, 0
    %p105 = por %p103, %p104
    %p106 = scmp.ne.s32.totalorder %s92, %s93
    %p107 = scmp.eq.s32.totalorder %s17, 1
    %p108 = por %p106, %p107
    %p110 = scmp.ne.s32.totalorder %s93, %s109
    %p111 = scmp.eq.s32.totalorder %s17, 0
    %p112 = por %p110, %p111
    %s113 = ssub.s32 %s11, %s18
    %p114 = scmp.eq.s32.totalorder %s113, 0
    %s116 = sadd.s32 %s115, 1
    %s117 = scalar_select %p114, %s115, %s116
    %p120 = pneg %p114
    %p121 = scmp.eq.s32.totalorder %s11, 1
    %p122 = por %p120, %p121
    %p123 = scmp.ne.s32.totalorder %s115, %s118
    %p124 = scmp.eq.s32.totalorder %s11, 0
    %p125 = por %p123, %p124
    %p126 = scmp.ne.s32.totalorder %s115, %s118
    %p127 = scmp.eq.s32.totalorder %s16, 1
    %p128 = por %p126, %p127
    %p129 = scmp.ne.s32.totalorder %s118, %s119
    %p130 = scmp.eq.s32.totalorder %s16, 0
    %p131 = por %p129, %p130
    %p132 = scmp.ne.s32.totalorder %s118, %s119
    %p133 = scmp.eq.s32.totalorder %s17, 1
    %p134 = por %p132, %p133
    %p136 = scmp.ne.s32.totalorder %s119, %s135
    %p137 = scmp.eq.s32.totalorder %s17, 0
    %p138 = por %p136, %p137
    %p139 = scmp.le.s32.totalorder 1, %s11
    %p140 = scmp.lt.s32.totalorder %s11, 3
    %p141 = pnand %p139, %p140
    %p142 = pneg %p141
    // Predicated region
    $region9: #{policy_forward_batch.1} parent=5 // pred_check
      _
    $region10: #{policy_forward_batch.1} parent=5 // pred_check_branch
      %144 = sbr.rel (%p141) target = $region12
    $region11: #{policy_forward_batch.1} parent=5 // pred_region
      %s145 = ssub.s32 %s11, 1
      // Predicated region
      $region13: #{policy_forward_batch.1} parent=11 // pred_check
        %p146 = pneg %p58
      $region14: #{policy_forward_batch.1} parent=11 // pred_check_branch
        %148 = sbr.rel (%p146) target = $region16
      $region15: #{policy_forward_batch.1} parent=11 // pred_region
        _
      $region16: #{policy_forward_batch.1} parent=11 // pred_fallthru
        _
      // Predicated region
      $region17: #{policy_forward_batch.1} parent=11 // pred_check
        %p149 = pneg %p79
      $region18: #{policy_forward_batch.1} parent=11 // pred_check_branch
        %151 = sbr.rel (%p149) target = $region20
      $region19: #{policy_forward_batch.1} parent=11 // pred_region
        _
      $region20: #{policy_forward_batch.1} parent=11 // pred_fallthru
        _
    $region12: #{policy_forward_batch.1} parent=5 // pred_fallthru
      _
    %p152 = scmp.lt.s32.totalorder %s11, 2
    // Predicated region
    $region21: #{policy_forward_batch.1} parent=5 // pred_check
      %p153 = pneg %p152
    $region22: #{policy_forward_batch.1} parent=5 // pred_check_branch
      %155 = sbr.rel (%p153) target = $region24
    $region23: #{policy_forward_batch.1} parent=5 // pred_region
      // Predicated region
      $region25: #{policy_forward_batch.1} parent=23 // pred_check
        %p156 = pneg %p31
      $region26: #{policy_forward_batch.1} parent=23 // pred_check_branch
        %158 = sbr.rel (%p156) target = $region28
      $region27: #{policy_forward_batch.1} parent=23 // pred_region
        %s159 = smul.u32 16, %s11
        %p160 = scmp.lt.s32.totalorder %s159, 31
        %s161 = scalar_select %p160, %s159, 31
        %s162 = smul.addr %s161, 8
        %s163 = scalar_lea.vmem %s0, %s162
        %s164 = smul.u32 16, %s11
      $region28: #{policy_forward_batch.1} parent=23 // pred_fallthru
        _
    $region24: #{policy_forward_batch.1} parent=5 // pred_fallthru
      _
    %p165 = scmp.le.s32.totalorder 1, %s11
    %p166 = scmp.lt.s32.totalorder %s11, 3
    %p167 = pnand %p165, %p166
    %p168 = pneg %p167
    // Predicated region
    $region29: #{policy_forward_batch.1} parent=5 // pred_check
      _
    $region30: #{policy_forward_batch.1} parent=5 // pred_check_branch
      %170 = sbr.rel (%p167) target = $region32
    $region31: #{policy_forward_batch.1} parent=5 // pred_region
      %s171 = ssub.s32 %s11, 1
      %s172 = smul.u32 16, %s16
      %p173 = scmp.lt.s32.totalorder %s172, 31
      %s174 = scalar_select %p173, %s172, 31
      %s175 = smul.addr %s174, 8
      %s176 = scalar_lea.vmem %s0, %s175
      %p177 = pneg %p37
      %p178 = pneg %p34
      %p179 = pneg %p58
      %p180 = pneg %p55
      %p181 = pneg %p79
      %p182 = pneg %p76
      %p183 = pneg %p105
      %p184 = pneg %p102
      %s185 = smul.u32 16, %s16
      %p186 = scmp.lt.s32.totalorder %s185, 31
      %s187 = scalar_select %p186, %s185, 31
      %s188 = smul.addr %s187, 8
      %s189 = scalar_lea.vmem %s3, %s188
      %p190 = pneg %p131
      %p191 = pneg %p128
      %s192 = smul.u32 16, %s16
      %p193 = scmp.lt.s32.totalorder %s192, 31
      %s194 = scalar_select %p193, %s192, 31
      %s195 = smul.addr %s194, 8
      %s196 = scalar_lea.vmem %s4, %s195
      %s197 = smul.u32 16, %s16
      %p198 = scmp.lt.s32.totalorder %s197, 31
      %s199 = scalar_select %p198, %s197, 31
      %s200 = smul.addr %s199, 8
      %s201 = scalar_lea.vmem %s0, %s200
      %s202 = smul.u32 16, %s16
      %s203 = smul.u32 16, %s16
      %p204 = scmp.lt.s32.totalorder %s203, 31
      %s205 = scalar_select %p204, %s203, 31
      %s206 = smul.addr %s205, 8
      %s207 = scalar_lea.vmem %s3, %s206
      %s208 = smul.u32 16, %s16
      %s209 = smul.u32 16, %s16
      %p210 = scmp.lt.s32.totalorder %s209, 31
      %s211 = scalar_select %p210, %s209, 31
      %s212 = smul.addr %s211, 8
      %s213 = scalar_lea.vmem %s4, %s212
      %s214 = smul.u32 16, %s16
      %v216 = vld [vmem:[%s201] sm:$0xff]
      %v217 = vld [vmem:[%s201 + $0x8] sm:$0xff]
      %v218 = vld [vmem:[%s201 + $0x10] sm:$0xff]
      %v219 = vld [vmem:[%s201 + $0x18] sm:$0xff]
      %v220 = vld [vmem:[%s201 + $0x20] sm:$0xff]
      %v221 = vld [vmem:[%s201 + $0x28] sm:$0xff]
      %v222 = vld [vmem:[%s201 + $0x30] sm:$0xff]
      %v223 = vld [vmem:[%s201 + $0x38] sm:$0xff]
      %v224 = vld [vmem:[%s201 + $0x40] sm:$0xff]
      %v225 = vld [vmem:[%s201 + $0x48] sm:$0xff]
      %v226 = vld [vmem:[%s201 + $0x50] sm:$0xff]
      %v227 = vld [vmem:[%s201 + $0x58] sm:$0xff]
      %v228 = vld [vmem:[%s201 + $0x60] sm:$0xff]
      %v229 = vld [vmem:[%s201 + $0x68] sm:$0xff]
      %v230 = vld [vmem:[%s201 + $0x70] sm:$0xff]
      %v231 = vld [vmem:[%s201 + $0x78] sm:$0xff]
      %v232 = vld [vmem:[%s2] sm:$0xff]
      %234 = vset.pattern.permute.xlu0 0
      %235 = vperm.xlu0 %234, %v216
      %v236 = vpop.permute.xlu0 %235
      %239 = vset.pattern.permute.xlu0 0
      %240 = vperm.xlu0 %239, %v217
      %v241 = vpop.permute.xlu0 %240
      %244 = vset.pattern.permute.xlu0 0
      %245 = vperm.xlu0 %244, %v218
      %v246 = vpop.permute.xlu0 %245
      %249 = vset.pattern.permute.xlu0 0
      %250 = vperm.xlu0 %249, %v219
      %v251 = vpop.permute.xlu0 %250
      %254 = vset.pattern.permute.xlu0 0
      %255 = vperm.xlu0 %254, %v220
      %v256 = vpop.permute.xlu0 %255
      %259 = vset.pattern.permute.xlu0 0
      %260 = vperm.xlu0 %259, %v221
      %v261 = vpop.permute.xlu0 %260
      %264 = vset.pattern.permute.xlu0 0
      %265 = vperm.xlu0 %264, %v222
      %v266 = vpop.permute.xlu0 %265
      %269 = vset.pattern.permute.xlu0 0
      %270 = vperm.xlu0 %269, %v223
      %v271 = vpop.permute.xlu0 %270
      %274 = vset.pattern.permute.xlu0 0
      %275 = vperm.xlu0 %274, %v224
      %v276 = vpop.permute.xlu0 %275
      %279 = vset.pattern.permute.xlu0 0
      %280 = vperm.xlu0 %279, %v225
      %v281 = vpop.permute.xlu0 %280
      %284 = vset.pattern.permute.xlu0 0
      %285 = vperm.xlu0 %284, %v226
      %v286 = vpop.permute.xlu0 %285
      %289 = vset.pattern.permute.xlu0 0
      %290 = vperm.xlu0 %289, %v227
      %v291 = vpop.permute.xlu0 %290
      %294 = vset.pattern.permute.xlu0 0
      %295 = vperm.xlu0 %294, %v228
      %v296 = vpop.permute.xlu0 %295
      %299 = vset.pattern.permute.xlu0 0
      %300 = vperm.xlu0 %299, %v229
      %v301 = vpop.permute.xlu0 %300
      %304 = vset.pattern.permute.xlu0 0
      %305 = vperm.xlu0 %304, %v230
      %v306 = vpop.permute.xlu0 %305
      %309 = vset.pattern.permute.xlu0 0
      %310 = vperm.xlu0 %309, %v231
      %v311 = vpop.permute.xlu0 %310
      %v313 = vlaneseq
      %v314 = vshrl.u32 %v313, 7
      %v315 = vsub.s32 0, %v314
      %v316 = vrot.slane %v232, %v315
      %v317 = vmul.f32 %v236, %v316
      %v318 = vmul.f32 %v241, %v316
      %v319 = vmul.f32 %v246, %v316
      %v320 = vmul.f32 %v251, %v316
      %v321 = vmul.f32 %v256, %v316
      %v322 = vmul.f32 %v261, %v316
      %v323 = vmul.f32 %v266, %v316
      %v324 = vmul.f32 %v271, %v316
      %v325 = vmul.f32 %v276, %v316
      %v326 = vmul.f32 %v281, %v316
      %v327 = vmul.f32 %v286, %v316
      %v328 = vmul.f32 %v291, %v316
      %v329 = vmul.f32 %v296, %v316
      %v330 = vmul.f32 %v301, %v316
      %v331 = vmul.f32 %v306, %v316
      %v332 = vmul.f32 %v311, %v316
      %333 = vset.pattern.permute.xlu0 1
      %334 = vperm.xlu0 %333, %v216
      %v335 = vpop.permute.xlu0 %334
      %337 = vset.pattern.permute.xlu0 1
      %338 = vperm.xlu0 %337, %v217
      %v339 = vpop.permute.xlu0 %338
      %341 = vset.pattern.permute.xlu0 1
      %342 = vperm.xlu0 %341, %v218
      %v343 = vpop.permute.xlu0 %342
      %345 = vset.pattern.permute.xlu0 1
      %346 = vperm.xlu0 %345, %v219
      %v347 = vpop.permute.xlu0 %346
      %349 = vset.pattern.permute.xlu0 1
      %350 = vperm.xlu0 %349, %v220
      %v351 = vpop.permute.xlu0 %350
      %353 = vset.pattern.permute.xlu0 1
      %354 = vperm.xlu0 %353, %v221
      %v355 = vpop.permute.xlu0 %354
      %357 = vset.pattern.permute.xlu0 1
      %358 = vperm.xlu0 %357, %v222
      %v359 = vpop.permute.xlu0 %358
      %361 = vset.pattern.permute.xlu0 1
      %362 = vperm.xlu0 %361, %v223
      %v363 = vpop.permute.xlu0 %362
      %365 = vset.pattern.permute.xlu0 1
      %366 = vperm.xlu0 %365, %v224
      %v367 = vpop.permute.xlu0 %366
      %369 = vset.pattern.permute.xlu0 1
      %370 = vperm.xlu0 %369, %v225
      %v371 = vpop.permute.xlu0 %370
      %373 = vset.pattern.permute.xlu0 1
      %374 = vperm.xlu0 %373, %v226
      %v375 = vpop.permute.xlu0 %374
      %377 = vset.pattern.permute.xlu0 1
      %378 = vperm.xlu0 %377, %v227
      %v379 = vpop.permute.xlu0 %378
      %381 = vset.pattern.permute.xlu0 1
      %382 = vperm.xlu0 %381, %v228
      %v383 = vpop.permute.xlu0 %382
      %385 = vset.pattern.permute.xlu0 1
      %386 = vperm.xlu0 %385, %v229
      %v387 = vpop.permute.xlu0 %386
      %389 = vset.pattern.permute.xlu0 1
      %390 = vperm.xlu0 %389, %v230
      %v391 = vpop.permute.xlu0 %390
      %393 = vset.pattern.permute.xlu0 1
      %394 = vperm.xlu0 %393, %v231
      %v395 = vpop.permute.xlu0 %394
      %v397 = vlaneseq
      %v398 = vshrl.u32 %v397, 7
      %v399 = vsub.s32 1, %v398
      %v400 = vrot.slane %v232, %v399
      %v401 = vmul.f32 %v335, %v400
      %v402 = vmul.f32 %v339, %v400
      %v403 = vmul.f32 %v343, %v400
      %v404 = vmul.f32 %v347, %v400
      %v405 = vmul.f32 %v351, %v400
      %v406 = vmul.f32 %v355, %v400
      %v407 = vmul.f32 %v359, %v400
      %v408 = vmul.f32 %v363, %v400
      %v409 = vmul.f32 %v367, %v400
      %v410 = vmul.f32 %v371, %v400
      %v411 = vmul.f32 %v375, %v400
      %v412 = vmul.f32 %v379, %v400
      %v413 = vmul.f32 %v383, %v400
      %v414 = vmul.f32 %v387, %v400
      %v415 = vmul.f32 %v391, %v400
      %v416 = vmul.f32 %v395, %v400
      %v417 = vadd.f32 %v317, %v401
      %v418 = vadd.f32 %v318, %v402
      %v419 = vadd.f32 %v319, %v403
      %v420 = vadd.f32 %v320, %v404
      %v421 = vadd.f32 %v321, %v405
      %v422 = vadd.f32 %v322, %v406
      %v423 = vadd.f32 %v323, %v407
      %v424 = vadd.f32 %v324, %v408
      %v425 = vadd.f32 %v325, %v409
      %v426 = vadd.f32 %v326, %v410
      %v427 = vadd.f32 %v327, %v411
      %v428 = vadd.f32 %v328, %v412
      %v429 = vadd.f32 %v329, %v413
      %v430 = vadd.f32 %v330, %v414
      %v431 = vadd.f32 %v331, %v415
      %v432 = vadd.f32 %v332, %v416
      %433 = vset.pattern.permute.xlu0 2
      %434 = vperm.xlu0 %433, %v216
      %v435 = vpop.permute.xlu0 %434
      %437 = vset.pattern.permute.xlu0 2
      %438 = vperm.xlu0 %437, %v217
      %v439 = vpop.permute.xlu0 %438
      %441 = vset.pattern.permute.xlu0 2
      %442 = vperm.xlu0 %441, %v218
      %v443 = vpop.permute.xlu0 %442
      %445 = vset.pattern.permute.xlu0 2
      %446 = vperm.xlu0 %445, %v219
      %v447 = vpop.permute.xlu0 %446
      %449 = vset.pattern.permute.xlu0 2
      %450 = vperm.xlu0 %449, %v220
      %v451 = vpop.permute.xlu0 %450
      %453 = vset.pattern.permute.xlu0 2
      %454 = vperm.xlu0 %453, %v221
      %v455 = vpop.permute.xlu0 %454
      %457 = vset.pattern.permute.xlu0 2
      %458 = vperm.xlu0 %457, %v222
      %v459 = vpop.permute.xlu0 %458
      %461 = vset.pattern.permute.xlu0 2
      %462 = vperm.xlu0 %461, %v223
      %v463 = vpop.permute.xlu0 %462
      %465 = vset.pattern.permute.xlu0 2
      %466 = vperm.xlu0 %465, %v224
      %v467 = vpop.permute.xlu0 %466
      %469 = vset.pattern.permute.xlu0 2
      %470 = vperm.xlu0 %469, %v225
      %v471 = vpop.permute.xlu0 %470
      %473 = vset.pattern.permute.xlu0 2
      %474 = vperm.xlu0 %473, %v226
      %v475 = vpop.permute.xlu0 %474
      %477 = vset.pattern.permute.xlu0 2
      %478 = vperm.xlu0 %477, %v227
      %v479 = vpop.permute.xlu0 %478
      %481 = vset.pattern.permute.xlu0 2
      %482 = vperm.xlu0 %481, %v228
      %v483 = vpop.permute.xlu0 %482
      %485 = vset.pattern.permute.xlu0 2
      %486 = vperm.xlu0 %485, %v229
      %v487 = vpop.permute.xlu0 %486
      %489 = vset.pattern.permute.xlu0 2
      %490 = vperm.xlu0 %489, %v230
      %v491 = vpop.permute.xlu0 %490
      %493 = vset.pattern.permute.xlu0 2
      %494 = vperm.xlu0 %493, %v231
      %v495 = vpop.permute.xlu0 %494
      %v497 = vlaneseq
      %v498 = vshrl.u32 %v497, 7
      %v499 = vsub.s32 2, %v498
      %v500 = vrot.slane %v232, %v499
      %v501 = vmul.f32 %v435, %v500
      %v502 = vmul.f32 %v439, %v500
      %v503 = vmul.f32 %v443, %v500
      %v504 = vmul.f32 %v447, %v500
      %v505 = vmul.f32 %v451, %v500
      %v506 = vmul.f32 %v455, %v500
      %v507 = vmul.f32 %v459, %v500
      %v508 = vmul.f32 %v463, %v500
      %v509 = vmul.f32 %v467, %v500
      %v510 = vmul.f32 %v471, %v500
      %v511 = vmul.f32 %v475, %v500
      %v512 = vmul.f32 %v479, %v500
      %v513 = vmul.f32 %v483, %v500
      %v514 = vmul.f32 %v487, %v500
      %v515 = vmul.f32 %v491, %v500
      %v516 = vmul.f32 %v495, %v500
      %v517 = vadd.f32 %v417, %v501
      %v518 = vadd.f32 %v418, %v502
      %v519 = vadd.f32 %v419, %v503
      %v520 = vadd.f32 %v420, %v504
      %v521 = vadd.f32 %v421, %v505
      %v522 = vadd.f32 %v422, %v506
      %v523 = vadd.f32 %v423, %v507
      %v524 = vadd.f32 %v424, %v508
      %v525 = vadd.f32 %v425, %v509
      %v526 = vadd.f32 %v426, %v510
      %v527 = vadd.f32 %v427, %v511
      %v528 = vadd.f32 %v428, %v512
      %v529 = vadd.f32 %v429, %v513
      %v530 = vadd.f32 %v430, %v514
      %v531 = vadd.f32 %v431, %v515
      %v532 = vadd.f32 %v432, %v516
      %533 = vset.pattern.permute.xlu0 3
      %534 = vperm.xlu0 %533, %v216
      %v535 = vpop.permute.xlu0 %534
      %537 = vset.pattern.permute.xlu0 3
      %538 = vperm.xlu0 %537, %v217
      %v539 = vpop.permute.xlu0 %538
      %541 = vset.pattern.permute.xlu0 3
      %542 = vperm.xlu0 %541, %v218
      %v543 = vpop.permute.xlu0 %542
      %545 = vset.pattern.permute.xlu0 3
      %546 = vperm.xlu0 %545, %v219
      %v547 = vpop.permute.xlu0 %546
      %549 = vset.pattern.permute.xlu0 3
      %550 = vperm.xlu0 %549, %v220
      %v551 = vpop.permute.xlu0 %550
      %553 = vset.pattern.permute.xlu0 3
      %554 = vperm.xlu0 %553, %v221
      %v555 = vpop.permute.xlu0 %554
      %557 = vset.pattern.permute.xlu0 3
      %558 = vperm.xlu0 %557, %v222
      %v559 = vpop.permute.xlu0 %558
      %561 = vset.pattern.permute.xlu0 3
      %562 = vperm.xlu0 %561, %v223
      %v563 = vpop.permute.xlu0 %562
      %565 = vset.pattern.permute.xlu0 3
      %566 = vperm.xlu0 %565, %v224
      %v567 = vpop.permute.xlu0 %566
      %569 = vset.pattern.permute.xlu0 3
      %570 = vperm.xlu0 %569, %v225
      %v571 = vpop.permute.xlu0 %570
      %573 = vset.pattern.permute.xlu0 3
      %574 = vperm.xlu0 %573, %v226
      %v575 = vpop.permute.xlu0 %574
      %577 = vset.pattern.permute.xlu0 3
      %578 = vperm.xlu0 %577, %v227
      %v579 = vpop.permute.xlu0 %578
      %581 = vset.pattern.permute.xlu0 3
      %582 = vperm.xlu0 %581, %v228
      %v583 = vpop.permute.xlu0 %582
      %585 = vset.pattern.permute.xlu0 3
      %586 = vperm.xlu0 %585, %v229
      %v587 = vpop.permute.xlu0 %586
      %589 = vset.pattern.permute.xlu0 3
      %590 = vperm.xlu0 %589, %v230
      %v591 = vpop.permute.xlu0 %590
      %593 = vset.pattern.permute.xlu0 3
      %594 = vperm.xlu0 %593, %v231
      %v595 = vpop.permute.xlu0 %594
      %v597 = vlaneseq
      %v598 = vshrl.u32 %v597, 7
      %v599 = vsub.s32 3, %v598
      %v600 = vrot.slane %v232, %v599
      %v601 = vmul.f32 %v535, %v600
      %v602 = vmul.f32 %v539, %v600
      %v603 = vmul.f32 %v543, %v600
      %v604 = vmul.f32 %v547, %v600
      %v605 = vmul.f32 %v551, %v600
      %v606 = vmul.f32 %v555, %v600
      %v607 = vmul.f32 %v559, %v600
      %v608 = vmul.f32 %v563, %v600
      %v609 = vmul.f32 %v567, %v600
      %v610 = vmul.f32 %v571, %v600
      %v611 = vmul.f32 %v575, %v600
      %v612 = vmul.f32 %v579, %v600
      %v613 = vmul.f32 %v583, %v600
      %v614 = vmul.f32 %v587, %v600
      %v615 = vmul.f32 %v591, %v600
      %v616 = vmul.f32 %v595, %v600
      %v617 = vadd.f32 %v517, %v601
      %v618 = vadd.f32 %v518, %v602
      %v619 = vadd.f32 %v519, %v603
      %v620 = vadd.f32 %v520, %v604
      %v621 = vadd.f32 %v521, %v605
      %v622 = vadd.f32 %v522, %v606
      %v623 = vadd.f32 %v523, %v607
      %v624 = vadd.f32 %v524, %v608
      %v625 = vadd.f32 %v525, %v609
      %v626 = vadd.f32 %v526, %v610
      %v627 = vadd.f32 %v527, %v611
      %v628 = vadd.f32 %v528, %v612
      %v629 = vadd.f32 %v529, %v613
      %v630 = vadd.f32 %v530, %v614
      %v631 = vadd.f32 %v531, %v615
      %v632 = vadd.f32 %v532, %v616
      %v633 = vlaneseq
      %v634 = vshrl.u32 %v633, 7
      %v635 = vsub.s32 4, %v634
      %v636 = vrot.slane %v232, %v635
      %v637 = vadd.f32 %v617, %v636
      %v638 = vadd.f32 %v618, %v636
      %v639 = vadd.f32 %v619, %v636
      %v640 = vadd.f32 %v620, %v636
      %v641 = vadd.f32 %v621, %v636
      %v642 = vadd.f32 %v622, %v636
      %v643 = vadd.f32 %v623, %v636
      %v644 = vadd.f32 %v624, %v636
      %v645 = vadd.f32 %v625, %v636
      %v646 = vadd.f32 %v626, %v636
      %v647 = vadd.f32 %v627, %v636
      %v648 = vadd.f32 %v628, %v636
      %v649 = vadd.f32 %v629, %v636
      %v650 = vadd.f32 %v630, %v636
      %v651 = vadd.f32 %v631, %v636
      %v652 = vadd.f32 %v632, %v636
      %v653 = vmax.f32 %v637, 0.0
      %v654 = vmax.f32 %v638, 0.0
      %v655 = vmax.f32 %v639, 0.0
      %v656 = vmax.f32 %v640, 0.0
      %v657 = vmax.f32 %v641, 0.0
      %v658 = vmax.f32 %v642, 0.0
      %v659 = vmax.f32 %v643, 0.0
      %v660 = vmax.f32 %v644, 0.0
      %v661 = vmax.f32 %v645, 0.0
      %v662 = vmax.f32 %v646, 0.0
      %v663 = vmax.f32 %v647, 0.0
      %v664 = vmax.f32 %v648, 0.0
      %v665 = vmax.f32 %v649, 0.0
      %v666 = vmax.f32 %v650, 0.0
      %v667 = vmax.f32 %v651, 0.0
      %v668 = vmax.f32 %v652, 0.0
      %v669 = vpack.c.bf16 %v654, %v653
      %v670 = vpack.c.bf16 %v656, %v655
      %v671 = vpack.c.bf16 %v658, %v657
      %v672 = vpack.c.bf16 %v660, %v659
      %v673 = vpack.c.bf16 %v662, %v661
      %v674 = vpack.c.bf16 %v664, %v663
      %v675 = vpack.c.bf16 %v666, %v665
      %v676 = vpack.c.bf16 %v668, %v667
      %v677 = vld [vmem:[%s1] sm:$0xf]
      %v678 = vld [vmem:[%s1 + $0x4] sm:$0xf]
      %v679 = vld [vmem:[%s1 + $0x8] sm:$0xf]
      %v680 = vld [vmem:[%s1 + $0xc] sm:$0xf]
      %v681 = vld [vmem:[%s1 + $0x10] sm:$0xf]
      %v682 = vld [vmem:[%s1 + $0x14] sm:$0xf]
      %v683 = vld [vmem:[%s1 + $0x18] sm:$0xf]
      %v684 = vld [vmem:[%s1 + $0x1c] sm:$0xf]
      %v685 = vld [vmem:[%s1 + $0x20] sm:$0xf]
      %v686 = vld [vmem:[%s1 + $0x24] sm:$0xf]
      %v687 = vld [vmem:[%s1 + $0x28] sm:$0xf]
      %v688 = vld [vmem:[%s1 + $0x2c] sm:$0xf]
      %v689 = vld [vmem:[%s1 + $0x30] sm:$0xf]
      %v690 = vld [vmem:[%s1 + $0x34] sm:$0xf]
      %v691 = vld [vmem:[%s1 + $0x38] sm:$0xf]
      %v692 = vld [vmem:[%s1 + $0x3c] sm:$0xf]
      %v693 = vlaneseq
      %v694 = vshrl.u32 %v693, 7
      %v695 = vsub.s32 5, %v694
      %v696 = vrot.slane %v232, %v695
      %v713 = vunpack.c.l.b16 %v677
      %v714 = vunpack.c.l.b16 %v678
      %v715 = vunpack.c.l.b16 %v679
      %v716 = vunpack.c.l.b16 %v680
      %v717 = vunpack.c.l.b16 %v681
      %v718 = vunpack.c.l.b16 %v682
      %v719 = vunpack.c.l.b16 %v683
      %v720 = vunpack.c.l.b16 %v684
      %v721 = vunpack.c.l.b16 %v685
      %v722 = vunpack.c.l.b16 %v686
      %v723 = vunpack.c.l.b16 %v687
      %v724 = vunpack.c.l.b16 %v688
      %v725 = vunpack.c.l.b16 %v689
      %v726 = vunpack.c.l.b16 %v690
      %v727 = vunpack.c.l.b16 %v691
      %v728 = vunpack.c.l.b16 %v692
      %v729 = vpack.c.b16 %v714, %v713
      %v730 = vpack.c.b16 %v716, %v715
      %v731 = vpack.c.b16 %v718, %v717
      %v732 = vpack.c.b16 %v720, %v719
      %v733 = vpack.c.b16 %v722, %v721
      %v734 = vpack.c.b16 %v724, %v723
      %v735 = vpack.c.b16 %v726, %v725
      %v736 = vpack.c.b16 %v728, %v727
      %745 = vmatprep.subr.bf16.mxu0 0
      %746 = vmatpush1.bf16.msra.mxu0 %v729
      %747 = vmatprep.subr.bf16.mxu0 0
      %748 = vmatpush1.bf16.msra.mxu0 %v730
      %749 = vmatprep.subr.bf16.mxu0 0
      %750 = vmatpush1.bf16.msra.mxu0 %v731
      %751 = vmatprep.subr.bf16.mxu0 0
      %752 = vmatpush1.bf16.msra.mxu0 %v732
      %753 = vmatprep.subr.bf16.mxu0 0
      %754 = vmatpush1.bf16.msra.mxu0 %v733
      %755 = vmatprep.subr.bf16.mxu0 0
      %756 = vmatpush1.bf16.msra.mxu0 %v734
      %757 = vmatprep.subr.bf16.mxu0 0
      %758 = vmatpush1.bf16.msra.mxu0 %v735
      %759 = vmatprep.subr.bf16.mxu0 0
      %760 = vmatpush1.bf16.msra.mxu0 %v736
      %761 = vmatprep.subr.bf16.mxu0 0
      %762 = vmatpush1.bf16.msra.mxu0 0
      %763 = vmatprep.subr.bf16.mxu0 0
      %764 = vmatpush1.bf16.msra.mxu0 0
      %765 = vmatprep.subr.bf16.mxu0 0
      %766 = vmatpush1.bf16.msra.mxu0 0
      %767 = vmatprep.subr.bf16.mxu0 0
      %768 = vmatpush1.bf16.msra.mxu0 0
      %769 = vmatprep.subr.bf16.mxu0 0
      %770 = vmatpush1.bf16.msra.mxu0 0
      %771 = vmatprep.subr.bf16.mxu0 0
      %772 = vmatpush1.bf16.msra.mxu0 0
      %773 = vmatprep.subr.bf16.mxu0 0
      %774 = vmatpush1.bf16.msra.mxu0 0
      %775 = vmatprep.subr.bf16.mxu0 0
      %776 = vmatpush1.bf16.msra.mxu0 0
      %777 = vmatprep.mubr.bf16.mxu0 0
      %778 = vmatmul.mubr.bf16.gmra.mrb[0].mxu0 %v669
      %v779 = vpop.f32.mrb[0].mxu0
      %v780 = vadd.f32 %v696, %v779
      %v781 = vpop.f32.mrb[0].mxu0
      %v782 = vpop.f32.mrb[0].mxu0
      %v783 = vadd.f32 %v696, %v782
      %v784 = vpop.f32.mrb[0].mxu0
      %785 = vmatprep.mubr.bf16.mxu0 0
      %786 = vmatmul.mubr.bf16.gmra.mrb[0].mxu0 %v670
      %v787 = vpop.f32.mrb[0].mxu0
      %v788 = vadd.f32 %v696, %v787
      %v789 = vpop.f32.mrb[0].mxu0
      %v790 = vpop.f32.mrb[0].mxu0
      %v791 = vadd.f32 %v696, %v790
      %v792 = vpop.f32.mrb[0].mxu0
      %793 = vmatprep.mubr.bf16.mxu0 0
      %794 = vmatmul.mubr.bf16.gmra.mrb[0].mxu0 %v671
      %v795 = vpop.f32.mrb[0].mxu0
      %v796 = vadd.f32 %v696, %v795
      %v797 = vpop.f32.mrb[0].mxu0
      %v798 = vpop.f32.mrb[0].mxu0
      %v799 = vadd.f32 %v696, %v798
      %v800 = vpop.f32.mrb[0].mxu0
      %801 = vmatprep.mubr.bf16.mxu0 0
      %802 = vmatmul.mubr.bf16.gmra.mrb[0].mxu0 %v672
      %v803 = vpop.f32.mrb[0].mxu0
      %v804 = vadd.f32 %v696, %v803
      %v805 = vpop.f32.mrb[0].mxu0
      %v806 = vpop.f32.mrb[0].mxu0
      %v807 = vadd.f32 %v696, %v806
      %v808 = vpop.f32.mrb[0].mxu0
      %809 = vmatprep.mubr.bf16.mxu0 0
      %810 = vmatmul.mubr.bf16.gmra.mrb[0].mxu0 %v673
      %v811 = vpop.f32.mrb[0].mxu0
      %v812 = vadd.f32 %v696, %v811
      %v813 = vpop.f32.mrb[0].mxu0
      %v814 = vpop.f32.mrb[0].mxu0
      %v815 = vadd.f32 %v696, %v814
      %v816 = vpop.f32.mrb[0].mxu0
      %817 = vmatprep.mubr.bf16.mxu0 0
      %818 = vmatmul.mubr.bf16.gmra.mrb[0].mxu0 %v674
      %v819 = vpop.f32.mrb[0].mxu0
      %v820 = vadd.f32 %v696, %v819
      %v821 = vpop.f32.mrb[0].mxu0
      %v822 = vpop.f32.mrb[0].mxu0
      %v823 = vadd.f32 %v696, %v822
      %v824 = vpop.f32.mrb[0].mxu0
      %825 = vmatprep.mubr.bf16.mxu0 0
      %826 = vmatmul.mubr.bf16.gmra.mrb[0].mxu0 %v675
      %v827 = vpop.f32.mrb[0].mxu0
      %v828 = vadd.f32 %v696, %v827
      %v829 = vpop.f32.mrb[0].mxu0
      %v830 = vpop.f32.mrb[0].mxu0
      %v831 = vadd.f32 %v696, %v830
      %v832 = vpop.f32.mrb[0].mxu0
      %833 = vmatprep.mubr.bf16.mxu0 0
      %834 = vmatmul.mubr.bf16.gmra.mrb[0].mxu0 %v676
      %v835 = vpop.f32.mrb[0].mxu0
      %v836 = vadd.f32 %v696, %v835
      %v837 = vpop.f32.mrb[0].mxu0
      %v838 = vpop.f32.mrb[0].mxu0
      %v839 = vadd.f32 %v696, %v838
      %v840 = vpop.f32.mrb[0].mxu0
      %841 = vdwg.mxu0
      %v842 = vmax.f32 %v780, 0.0
      %v843 = vmax.f32 %v783, 0.0
      %v844 = vmax.f32 %v788, 0.0
      %v845 = vmax.f32 %v791, 0.0
      %v846 = vmax.f32 %v796, 0.0
      %v847 = vmax.f32 %v799, 0.0
      %v848 = vmax.f32 %v804, 0.0
      %v849 = vmax.f32 %v807, 0.0
      %v850 = vmax.f32 %v812, 0.0
      %v851 = vmax.f32 %v815, 0.0
      %v852 = vmax.f32 %v820, 0.0
      %v853 = vmax.f32 %v823, 0.0
      %v854 = vmax.f32 %v828, 0.0
      %v855 = vmax.f32 %v831, 0.0
      %v856 = vmax.f32 %v836, 0.0
      %v857 = vmax.f32 %v839, 0.0
      %v858 = vpack.c.bf16 %v843, %v842
      %v859 = vpack.c.bf16 %v845, %v844
      %v860 = vpack.c.bf16 %v847, %v846
      %v861 = vpack.c.bf16 %v849, %v848
      %v862 = vpack.c.bf16 %v851, %v850
      %v863 = vpack.c.bf16 %v853, %v852
      %v864 = vpack.c.bf16 %v855, %v854
      %v865 = vpack.c.bf16 %v857, %v856
      %v866 = vld [vmem:[%s1 + $0x40] sm:$0xf]
      %v867 = vld [vmem:[%s1 + $0x44] sm:$0xf]
      %v868 = vld [vmem:[%s1 + $0x48] sm:$0xf]
      %v869 = vld [vmem:[%s1 + $0x4c] sm:$0xf]
      %v870 = vld [vmem:[%s1 + $0x50] sm:$0xf]
      %v871 = vld [vmem:[%s1 + $0x54] sm:$0xf]
      %v872 = vld [vmem:[%s1 + $0x58] sm:$0xf]
      %v873 = vld [vmem:[%s1 + $0x5c] sm:$0xf]
      %v874 = vld [vmem:[%s1 + $0x60] sm:$0xf]
      %v875 = vld [vmem:[%s1 + $0x64] sm:$0xf]
      %v876 = vld [vmem:[%s1 + $0x68] sm:$0xf]
      %v877 = vld [vmem:[%s1 + $0x6c] sm:$0xf]
      %v878 = vld [vmem:[%s1 + $0x70] sm:$0xf]
      %v879 = vld [vmem:[%s1 + $0x74] sm:$0xf]
      %v880 = vld [vmem:[%s1 + $0x78] sm:$0xf]
      %v881 = vld [vmem:[%s1 + $0x7c] sm:$0xf]
      %v882 = vlaneseq
      %v883 = vshrl.u32 %v882, 7
      %v884 = vsub.s32 6, %v883
      %v885 = vrot.slane %v232, %v884
      %v902 = vunpack.c.l.b16 %v866
      %v903 = vunpack.c.l.b16 %v867
      %v904 = vunpack.c.l.b16 %v868
      %v905 = vunpack.c.l.b16 %v869
      %v906 = vunpack.c.l.b16 %v870
      %v907 = vunpack.c.l.b16 %v871
      %v908 = vunpack.c.l.b16 %v872
      %v909 = vunpack.c.l.b16 %v873
      %v910 = vunpack.c.l.b16 %v874
      %v911 = vunpack.c.l.b16 %v875
      %v912 = vunpack.c.l.b16 %v876
      %v913 = vunpack.c.l.b16 %v877
      %v914 = vunpack.c.l.b16 %v878
      %v915 = vunpack.c.l.b16 %v879
      %v916 = vunpack.c.l.b16 %v880
      %v917 = vunpack.c.l.b16 %v881
      %v918 = vpack.c.b16 %v903, %v902
      %v919 = vpack.c.b16 %v905, %v904
      %v920 = vpack.c.b16 %v907, %v906
      %v921 = vpack.c.b16 %v909, %v908
      %v922 = vpack.c.b16 %v911, %v910
      %v923 = vpack.c.b16 %v913, %v912
      %v924 = vpack.c.b16 %v915, %v914
      %v925 = vpack.c.b16 %v917, %v916
      %934 = vmatprep.subr.bf16.mxu0 0
      %935 = vmatpush1.bf16.msra.mxu0 %v918
      %936 = vmatprep.subr.bf16.mxu0 0
      %937 = vmatpush1.bf16.msra.mxu0 %v919
      %938 = vmatprep.subr.bf16.mxu0 0
      %939 = vmatpush1.bf16.msra.mxu0 %v920
      %940 = vmatprep.subr.bf16.mxu0 0
      %941 = vmatpush1.bf16.msra.mxu0 %v921
      %942 = vmatprep.subr.bf16.mxu0 0
      %943 = vmatpush1.bf16.msra.mxu0 %v922
      %944 = vmatprep.subr.bf16.mxu0 0
      %945 = vmatpush1.bf16.msra.mxu0 %v923
      %946 = vmatprep.subr.bf16.mxu0 0
      %947 = vmatpush1.bf16.msra.mxu0 %v924
      %948 = vmatprep.subr.bf16.mxu0 0
      %949 = vmatpush1.bf16.msra.mxu0 %v925
      %950 = vmatprep.subr.bf16.mxu0 0
      %951 = vmatpush1.bf16.msra.mxu0 0
      %952 = vmatprep.subr.bf16.mxu0 0
      %953 = vmatpush1.bf16.msra.mxu0 0
      %954 = vmatprep.subr.bf16.mxu0 0
      %955 = vmatpush1.bf16.msra.mxu0 0
      %956 = vmatprep.subr.bf16.mxu0 0
      %957 = vmatpush1.bf16.msra.mxu0 0
      %958 = vmatprep.subr.bf16.mxu0 0
      %959 = vmatpush1.bf16.msra.mxu0 0
      %960 = vmatprep.subr.bf16.mxu0 0
      %961 = vmatpush1.bf16.msra.mxu0 0
      %962 = vmatprep.subr.bf16.mxu0 0
      %963 = vmatpush1.bf16.msra.mxu0 0
      %964 = vmatprep.subr.bf16.mxu0 0
      %965 = vmatpush1.bf16.msra.mxu0 0
      %966 = vmatprep.mubr.bf16.mxu0 0
      %967 = vmatmul.mubr.bf16.gmra.mrb[0].mxu0 %v858
      %v968 = vpop.f32.mrb[0].mxu0
      %v969 = vadd.f32 %v885, %v968
      %v970 = vpop.f32.mrb[0].mxu0
      %v971 = vpop.f32.mrb[0].mxu0
      %v972 = vadd.f32 %v885, %v971
      %v973 = vpop.f32.mrb[0].mxu0
      %974 = vmatprep.mubr.bf16.mxu0 0
      %975 = vmatmul.mubr.bf16.gmra.mrb[0].mxu0 %v859
      %v976 = vpop.f32.mrb[0].mxu0
      %v977 = vadd.f32 %v885, %v976
      %v978 = vpop.f32.mrb[0].mxu0
      %v979 = vpop.f32.mrb[0].mxu0
      %v980 = vadd.f32 %v885, %v979
      %v981 = vpop.f32.mrb[0].mxu0
      %982 = vmatprep.mubr.bf16.mxu0 0
      %983 = vmatmul.mubr.bf16.gmra.mrb[0].mxu0 %v860
      %v984 = vpop.f32.mrb[0].mxu0
      %v985 = vadd.f32 %v885, %v984
      %v986 = vpop.f32.mrb[0].mxu0
      %v987 = vpop.f32.mrb[0].mxu0
      %v988 = vadd.f32 %v885, %v987
      %v989 = vpop.f32.mrb[0].mxu0
      %990 = vmatprep.mubr.bf16.mxu0 0
      %991 = vmatmul.mubr.bf16.gmra.mrb[0].mxu0 %v861
      %v992 = vpop.f32.mrb[0].mxu0
      %v993 = vadd.f32 %v885, %v992
      %v994 = vpop.f32.mrb[0].mxu0
      %v995 = vpop.f32.mrb[0].mxu0
      %v996 = vadd.f32 %v885, %v995
      %v997 = vpop.f32.mrb[0].mxu0
      %998 = vmatprep.mubr.bf16.mxu0 0
      %999 = vmatmul.mubr.bf16.gmra.mrb[0].mxu0 %v862
      %v1000 = vpop.f32.mrb[0].mxu0
      %v1001 = vadd.f32 %v885, %v1000
      %v1002 = vpop.f32.mrb[0].mxu0
      %v1003 = vpop.f32.mrb[0].mxu0
      %v1004 = vadd.f32 %v885, %v1003
      %v1005 = vpop.f32.mrb[0].mxu0
      %1006 = vmatprep.mubr.bf16.mxu0 0
      %1007 = vmatmul.mubr.bf16.gmra.mrb[0].mxu0 %v863
      %v1008 = vpop.f32.mrb[0].mxu0
      %v1009 = vadd.f32 %v885, %v1008
      %v1010 = vpop.f32.mrb[0].mxu0
      %v1011 = vpop.f32.mrb[0].mxu0
      %v1012 = vadd.f32 %v885, %v1011
      %v1013 = vpop.f32.mrb[0].mxu0
      %1014 = vmatprep.mubr.bf16.mxu0 0
      %1015 = vmatmul.mubr.bf16.gmra.mrb[0].mxu0 %v864
      %v1016 = vpop.f32.mrb[0].mxu0
      %v1017 = vadd.f32 %v885, %v1016
      %v1018 = vpop.f32.mrb[0].mxu0
      %v1019 = vpop.f32.mrb[0].mxu0
      %v1020 = vadd.f32 %v885, %v1019
      %v1021 = vpop.f32.mrb[0].mxu0
      %1022 = vmatprep.mubr.bf16.mxu0 0
      %1023 = vmatmul.mubr.bf16.gmra.mrb[0].mxu0 %v865
      %v1024 = vpop.f32.mrb[0].mxu0
      %v1025 = vadd.f32 %v885, %v1024
      %v1026 = vpop.f32.mrb[0].mxu0
      %v1027 = vpop.f32.mrb[0].mxu0
      %v1028 = vadd.f32 %v885, %v1027
      %v1029 = vpop.f32.mrb[0].mxu0
      %1030 = vdwg.mxu0
      %1031 = vmax.xlane.f32.xlu0 %v969
      %v1032 = vpop.xlane.xlu0 %1031
      %1033 = vmax.xlane.f32.xlu0 %v972
      %v1034 = vpop.xlane.xlu0 %1033
      %1035 = vmax.xlane.f32.xlu0 %v977
      %v1036 = vpop.xlane.xlu0 %1035
      %1037 = vmax.xlane.f32.xlu0 %v980
      %v1038 = vpop.xlane.xlu0 %1037
      %1039 = vmax.xlane.f32.xlu0 %v985
      %v1040 = vpop.xlane.xlu0 %1039
      %1041 = vmax.xlane.f32.xlu0 %v988
      %v1042 = vpop.xlane.xlu0 %1041
      %1043 = vmax.xlane.f32.xlu0 %v993
      %v1044 = vpop.xlane.xlu0 %1043
      %1045 = vmax.xlane.f32.xlu0 %v996
      %v1046 = vpop.xlane.xlu0 %1045
      %1047 = vmax.xlane.f32.xlu0 %v1001
      %v1048 = vpop.xlane.xlu0 %1047
      %1049 = vmax.xlane.f32.xlu0 %v1004
      %v1050 = vpop.xlane.xlu0 %1049
      %1051 = vmax.xlane.f32.xlu0 %v1009
      %v1052 = vpop.xlane.xlu0 %1051
      %1053 = vmax.xlane.f32.xlu0 %v1012
      %v1054 = vpop.xlane.xlu0 %1053
      %1055 = vmax.xlane.f32.xlu0 %v1017
      %v1056 = vpop.xlane.xlu0 %1055
      %1057 = vmax.xlane.f32.xlu0 %v1020
      %v1058 = vpop.xlane.xlu0 %1057
      %1059 = vmax.xlane.f32.xlu0 %v1025
      %v1060 = vpop.xlane.xlu0 %1059
      %1061 = vmax.xlane.f32.xlu0 %v1028
      %v1062 = vpop.xlane.xlu0 %1061
      %v1063 = vsub.f32 %v969, %v1032
      %v1064 = vsub.f32 %v972, %v1034
      %v1065 = vsub.f32 %v977, %v1036
      %v1066 = vsub.f32 %v980, %v1038
      %v1067 = vsub.f32 %v985, %v1040
      %v1068 = vsub.f32 %v988, %v1042
      %v1069 = vsub.f32 %v993, %v1044
      %v1070 = vsub.f32 %v996, %v1046
      %v1071 = vsub.f32 %v1001, %v1048
      %v1072 = vsub.f32 %v1004, %v1050
      %v1073 = vsub.f32 %v1009, %v1052
      %v1074 = vsub.f32 %v1012, %v1054
      %v1075 = vsub.f32 %v1017, %v1056
      %v1076 = vsub.f32 %v1020, %v1058
      %v1077 = vsub.f32 %v1025, %v1060
      %v1078 = vsub.f32 %v1028, %v1062
      %v1079 = vmul.f32 %v1063, 1.442695
      %v1080 = vpow.pop %v1079
      %v1081 = vmul.f32 %v1064, 1.442695
      %v1082 = vpow.pop %v1081
      %v1083 = vmul.f32 %v1065, 1.442695
      %v1084 = vpow.pop %v1083
      %v1085 = vmul.f32 %v1066, 1.442695
      %v1086 = vpow.pop %v1085
      %v1087 = vmul.f32 %v1067, 1.442695
      %v1088 = vpow.pop %v1087
      %v1089 = vmul.f32 %v1068, 1.442695
      %v1090 = vpow.pop %v1089
      %v1091 = vmul.f32 %v1069, 1.442695
      %v1092 = vpow.pop %v1091
      %v1093 = vmul.f32 %v1070, 1.442695
      %v1094 = vpow.pop %v1093
      %v1095 = vmul.f32 %v1071, 1.442695
      %v1096 = vpow.pop %v1095
      %v1097 = vmul.f32 %v1072, 1.442695
      %v1098 = vpow.pop %v1097
      %v1099 = vmul.f32 %v1073, 1.442695
      %v1100 = vpow.pop %v1099
      %v1101 = vmul.f32 %v1074, 1.442695
      %v1102 = vpow.pop %v1101
      %v1103 = vmul.f32 %v1075, 1.442695
      %v1104 = vpow.pop %v1103
      %v1105 = vmul.f32 %v1076, 1.442695
      %v1106 = vpow.pop %v1105
      %v1107 = vmul.f32 %v1077, 1.442695
      %v1108 = vpow.pop %v1107
      %v1109 = vmul.f32 %v1078, 1.442695
      %v1110 = vpow.pop %v1109
      %1111 = vadd.xlane.f32.xlu0 %v1080
      %v1112 = vpop.xlane.xlu0 %1111
      %1113 = vadd.xlane.f32.xlu0 %v1082
      %v1114 = vpop.xlane.xlu0 %1113
      %1115 = vadd.xlane.f32.xlu0 %v1084
      %v1116 = vpop.xlane.xlu0 %1115
      %1117 = vadd.xlane.f32.xlu0 %v1086
      %v1118 = vpop.xlane.xlu0 %1117
      %1119 = vadd.xlane.f32.xlu0 %v1088
      %v1120 = vpop.xlane.xlu0 %1119
      %1121 = vadd.xlane.f32.xlu0 %v1090
      %v1122 = vpop.xlane.xlu0 %1121
      %1123 = vadd.xlane.f32.xlu0 %v1092
      %v1124 = vpop.xlane.xlu0 %1123
      %1125 = vadd.xlane.f32.xlu0 %v1094
      %v1126 = vpop.xlane.xlu0 %1125
      %1127 = vadd.xlane.f32.xlu0 %v1096
      %v1128 = vpop.xlane.xlu0 %1127
      %1129 = vadd.xlane.f32.xlu0 %v1098
      %v1130 = vpop.xlane.xlu0 %1129
      %1131 = vadd.xlane.f32.xlu0 %v1100
      %v1132 = vpop.xlane.xlu0 %1131
      %1133 = vadd.xlane.f32.xlu0 %v1102
      %v1134 = vpop.xlane.xlu0 %1133
      %1135 = vadd.xlane.f32.xlu0 %v1104
      %v1136 = vpop.xlane.xlu0 %1135
      %1137 = vadd.xlane.f32.xlu0 %v1106
      %v1138 = vpop.xlane.xlu0 %1137
      %1139 = vadd.xlane.f32.xlu0 %v1108
      %v1140 = vpop.xlane.xlu0 %1139
      %1141 = vadd.xlane.f32.xlu0 %v1110
      %v1142 = vpop.xlane.xlu0 %1141
      %v1143 = vrcp.pop %v1112
      %v1144 = vmul.f32 1.0, %v1143
      %v1145 = vrcp.pop %v1114
      %v1146 = vmul.f32 1.0, %v1145
      %v1147 = vrcp.pop %v1116
      %v1148 = vmul.f32 1.0, %v1147
      %v1149 = vrcp.pop %v1118
      %v1150 = vmul.f32 1.0, %v1149
      %v1151 = vrcp.pop %v1120
      %v1152 = vmul.f32 1.0, %v1151
      %v1153 = vrcp.pop %v1122
      %v1154 = vmul.f32 1.0, %v1153
      %v1155 = vrcp.pop %v1124
      %v1156 = vmul.f32 1.0, %v1155
      %v1157 = vrcp.pop %v1126
      %v1158 = vmul.f32 1.0, %v1157
      %v1159 = vrcp.pop %v1128
      %v1160 = vmul.f32 1.0, %v1159
      %v1161 = vrcp.pop %v1130
      %v1162 = vmul.f32 1.0, %v1161
      %v1163 = vrcp.pop %v1132
      %v1164 = vmul.f32 1.0, %v1163
      %v1165 = vrcp.pop %v1134
      %v1166 = vmul.f32 1.0, %v1165
      %v1167 = vrcp.pop %v1136
      %v1168 = vmul.f32 1.0, %v1167
      %v1169 = vrcp.pop %v1138
      %v1170 = vmul.f32 1.0, %v1169
      %v1171 = vrcp.pop %v1140
      %v1172 = vmul.f32 1.0, %v1171
      %v1173 = vrcp.pop %v1142
      %v1174 = vmul.f32 1.0, %v1173
      %v1175 = vmul.f32 %v1080, %v1144
      %v1176 = vmul.f32 %v1082, %v1146
      %v1177 = vmul.f32 %v1084, %v1148
      %v1178 = vmul.f32 %v1086, %v1150
      %v1179 = vmul.f32 %v1088, %v1152
      %v1180 = vmul.f32 %v1090, %v1154
      %v1181 = vmul.f32 %v1092, %v1156
      %v1182 = vmul.f32 %v1094, %v1158
      %v1183 = vmul.f32 %v1096, %v1160
      %v1184 = vmul.f32 %v1098, %v1162
      %v1185 = vmul.f32 %v1100, %v1164
      %v1186 = vmul.f32 %v1102, %v1166
      %v1187 = vmul.f32 %v1104, %v1168
      %v1188 = vmul.f32 %v1106, %v1170
      %v1189 = vmul.f32 %v1108, %v1172
      %v1190 = vmul.f32 %v1110, %v1174
      %v1191 = vlog2.pop %v1112
      %v1192 = vmul.f32 %v1191, 0.6931472
      %v1193 = vlog2.pop %v1114
      %v1194 = vmul.f32 %v1193, 0.6931472
      %v1195 = vlog2.pop %v1116
      %v1196 = vmul.f32 %v1195, 0.6931472
      %v1197 = vlog2.pop %v1118
      %v1198 = vmul.f32 %v1197, 0.6931472
      %v1199 = vlog2.pop %v1120
      %v1200 = vmul.f32 %v1199, 0.6931472
      %v1201 = vlog2.pop %v1122
      %v1202 = vmul.f32 %v1201, 0.6931472
      %v1203 = vlog2.pop %v1124
      %v1204 = vmul.f32 %v1203, 0.6931472
      %v1205 = vlog2.pop %v1126
      %v1206 = vmul.f32 %v1205, 0.6931472
      %v1207 = vlog2.pop %v1128
      %v1208 = vmul.f32 %v1207, 0.6931472
      %v1209 = vlog2.pop %v1130
      %v1210 = vmul.f32 %v1209, 0.6931472
      %v1211 = vlog2.pop %v1132
      %v1212 = vmul.f32 %v1211, 0.6931472
      %v1213 = vlog2.pop %v1134
      %v1214 = vmul.f32 %v1213, 0.6931472
      %v1215 = vlog2.pop %v1136
      %v1216 = vmul.f32 %v1215, 0.6931472
      %v1217 = vlog2.pop %v1138
      %v1218 = vmul.f32 %v1217, 0.6931472
      %v1219 = vlog2.pop %v1140
      %v1220 = vmul.f32 %v1219, 0.6931472
      %v1221 = vlog2.pop %v1142
      %v1222 = vmul.f32 %v1221, 0.6931472
      %v1223 = vsub.f32 %v1063, %v1192
      %v1224 = vsub.f32 %v1064, %v1194
      %v1225 = vsub.f32 %v1065, %v1196
      %v1226 = vsub.f32 %v1066, %v1198
      %v1227 = vsub.f32 %v1067, %v1200
      %v1228 = vsub.f32 %v1068, %v1202
      %v1229 = vsub.f32 %v1069, %v1204
      %v1230 = vsub.f32 %v1070, %v1206
      %v1231 = vsub.f32 %v1071, %v1208
      %v1232 = vsub.f32 %v1072, %v1210
      %v1233 = vsub.f32 %v1073, %v1212
      %v1234 = vsub.f32 %v1074, %v1214
      %v1235 = vsub.f32 %v1075, %v1216
      %v1236 = vsub.f32 %v1076, %v1218
      %v1237 = vsub.f32 %v1077, %v1220
      %v1238 = vsub.f32 %v1078, %v1222
      %vm1239 = vcmask 15360
      %1240 = vst.msk [vmem:[%s207] sm:$0xff] %vm1239, %v1175
      %1241 = vst.msk [vmem:[%s207 + $0x8] sm:$0xff] %vm1239, %v1176
      %1242 = vst.msk [vmem:[%s207 + $0x10] sm:$0xff] %vm1239, %v1177
      %1243 = vst.msk [vmem:[%s207 + $0x18] sm:$0xff] %vm1239, %v1178
      %1244 = vst.msk [vmem:[%s207 + $0x20] sm:$0xff] %vm1239, %v1179
      %1245 = vst.msk [vmem:[%s207 + $0x28] sm:$0xff] %vm1239, %v1180
      %1246 = vst.msk [vmem:[%s207 + $0x30] sm:$0xff] %vm1239, %v1181
      %1247 = vst.msk [vmem:[%s207 + $0x38] sm:$0xff] %vm1239, %v1182
      %1248 = vst.msk [vmem:[%s207 + $0x40] sm:$0xff] %vm1239, %v1183
      %1249 = vst.msk [vmem:[%s207 + $0x48] sm:$0xff] %vm1239, %v1184
      %1250 = vst.msk [vmem:[%s207 + $0x50] sm:$0xff] %vm1239, %v1185
      %1251 = vst.msk [vmem:[%s207 + $0x58] sm:$0xff] %vm1239, %v1186
      %1252 = vst.msk [vmem:[%s207 + $0x60] sm:$0xff] %vm1239, %v1187
      %1253 = vst.msk [vmem:[%s207 + $0x68] sm:$0xff] %vm1239, %v1188
      %1254 = vst.msk [vmem:[%s207 + $0x70] sm:$0xff] %vm1239, %v1189
      %1255 = vst.msk [vmem:[%s207 + $0x78] sm:$0xff] %vm1239, %v1190
      %1256 = vst.msk [vmem:[%s213] sm:$0xff] %vm1239, %v1223
      %1257 = vst.msk [vmem:[%s213 + $0x8] sm:$0xff] %vm1239, %v1224
      %1258 = vst.msk [vmem:[%s213 + $0x10] sm:$0xff] %vm1239, %v1225
      %1259 = vst.msk [vmem:[%s213 + $0x18] sm:$0xff] %vm1239, %v1226
      %1260 = vst.msk [vmem:[%s213 + $0x20] sm:$0xff] %vm1239, %v1227
      %1261 = vst.msk [vmem:[%s213 + $0x28] sm:$0xff] %vm1239, %v1228
      %1262 = vst.msk [vmem:[%s213 + $0x30] sm:$0xff] %vm1239, %v1229
      %1263 = vst.msk [vmem:[%s213 + $0x38] sm:$0xff] %vm1239, %v1230
      %1264 = vst.msk [vmem:[%s213 + $0x40] sm:$0xff] %vm1239, %v1231
      %1265 = vst.msk [vmem:[%s213 + $0x48] sm:$0xff] %vm1239, %v1232
      %1266 = vst.msk [vmem:[%s213 + $0x50] sm:$0xff] %vm1239, %v1233
      %1267 = vst.msk [vmem:[%s213 + $0x58] sm:$0xff] %vm1239, %v1234
      %1268 = vst.msk [vmem:[%s213 + $0x60] sm:$0xff] %vm1239, %v1235
      %1269 = vst.msk [vmem:[%s213 + $0x68] sm:$0xff] %vm1239, %v1236
      %1270 = vst.msk [vmem:[%s213 + $0x70] sm:$0xff] %vm1239, %v1237
      %1271 = vst.msk [vmem:[%s213 + $0x78] sm:$0xff] %vm1239, %v1238
      %s1272 = smul.u32 16, %s16
      %p1273 = scmp.lt.s32.totalorder %s1272, 31
      %s1274 = scalar_select %p1273, %s1272, 31
      %s1275 = smul.addr %s1274, 8
      %s1276 = scalar_lea.vmem %s3, %s1275
      %s1277 = smul.u32 16, %s16
      %p1278 = scmp.lt.s32.totalorder %s1277, 31
      %s1279 = scalar_select %p1278, %s1277, 31
      %s1280 = smul.addr %s1279, 8
      %s1281 = scalar_lea.vmem %s4, %s1280
      // Predicated region
      $region33: #{policy_forward_batch.1} parent=31 // pred_check
        %p1282 = pneg %p102
      $region34: #{policy_forward_batch.1} parent=31 // pred_check_branch
        %1284 = sbr.rel (%p1282) target = $region36
      $region35: #{policy_forward_batch.1} parent=31 // pred_region
        %s1285 = smul.u32 16, %s16
      $region36: #{policy_forward_batch.1} parent=31 // pred_fallthru
        _
      // Predicated region
      $region37: #{policy_forward_batch.1} parent=31 // pred_check
        %p1286 = pneg %p128
      $region38: #{policy_forward_batch.1} parent=31 // pred_check_branch
        %1288 = sbr.rel (%p1286) target = $region40
      $region39: #{policy_forward_batch.1} parent=31 // pred_region
        %s1289 = smul.u32 16, %s16
      $region40: #{policy_forward_batch.1} parent=31 // pred_fallthru
        _
    $region32: #{policy_forward_batch.1} parent=5 // pred_fallthru
      _
    %p1290 = scmp.le.s32.totalorder 2, %s11
    // Predicated region
    $region41: #{policy_forward_batch.1} parent=5 // pred_check
      %p1291 = pneg %p1290
    $region42: #{policy_forward_batch.1} parent=5 // pred_check_branch
      %1293 = sbr.rel (%p1291) target = $region44
    $region43: #{policy_forward_batch.1} parent=5 // pred_region
      %s1294 = ssub.s32 %s11, 2
      // Predicated region
      $region45: #{policy_forward_batch.1} parent=43 // pred_check
        %p1295 = pneg %p108
      $region46: #{policy_forward_batch.1} parent=43 // pred_check_branch
        %1297 = sbr.rel (%p1295) target = $region48
      $region47: #{policy_forward_batch.1} parent=43 // pred_region
        %s1298 = smul.u32 16, %s17
        %p1299 = scmp.lt.s32.totalorder %s1298, 31
        %s1300 = scalar_select %p1299, %s1298, 31
        %s1301 = smul.addr %s1300, 8
        %s1302 = scalar_lea.vmem %s3, %s1301
      $region48: #{policy_forward_batch.1} parent=43 // pred_fallthru
        _
      // Predicated region
      $region49: #{policy_forward_batch.1} parent=43 // pred_check
        %p1303 = pneg %p134
      $region50: #{policy_forward_batch.1} parent=43 // pred_check_branch
        %1305 = sbr.rel (%p1303) target = $region52
      $region51: #{policy_forward_batch.1} parent=43 // pred_region
        %s1306 = smul.u32 16, %s17
        %p1307 = scmp.lt.s32.totalorder %s1306, 31
        %s1308 = scalar_select %p1307, %s1306, 31
        %s1309 = smul.addr %s1308, 8
        %s1310 = scalar_lea.vmem %s4, %s1309
      $region52: #{policy_forward_batch.1} parent=43 // pred_fallthru
        _
    $region44: #{policy_forward_batch.1} parent=5 // pred_fallthru
      _
  $region6: #{policy_forward_batch.1} parent=0 // loop_footer
    %s15 = sadd.s32 1, %s11
  $region7: #{policy_forward_batch.1} parent=0 // loop_footer_branch
    %10 = sbr.rel target = $region3
  $region8: #{policy_forward_batch.1} parent=0 // loop_exit
    _

</llo_original>
